<compile_context>
chip_gen: v5e
topology: v5e:2x2
jax: 0.10.0
libtpu: 0.0.40
codegen_flags: <defaults>
</compile_context>

<pallas_src>
import functools

import jax
import jax.numpy as jnp
from jax.experimental import pallas as pl
from jax.experimental.pallas import tpu as pltpu


_MASK_VAL = -1e30             # finite "-inf" (in f32) for masked OOB classes
_MAX_C_BLOCK = 4096           # single-C-tile path up to this many (rounded) classes
_TARGET_TILE_BYTES = 4 << 20  # aim ~4 MiB of logits per grid step (HBM roofline)


def _round_up(x, m):
    return (x + m - 1) // m * m


def _ce_kernel(logits_ref, targets_ref, partial_ref, m_scr, l_scr, t_scr,
               *, n, c, tn, tc, mask_rows, mask_cols):
    ni = pl.program_id(0)
    ci = pl.program_id(1)
    last_ci = pl.num_programs(1) - 1

    @pl.when(ci == 0)
    def _init():
        m_scr[...] = jnp.full_like(m_scr, -jnp.inf)
        l_scr[...] = jnp.zeros_like(l_scr)
        t_scr[...] = jnp.zeros_like(t_scr)

    logits = logits_ref[...].astype(jnp.float32)      # (tn, tc)
    tgt = targets_ref[...]                            # (tn, 1) int32
    lane = jax.lax.broadcasted_iota(jnp.int32, (tn, tc), 1)

    if mask_cols:
        # Valid class iff global index < c  <=>  lane < (c - ci*tc) (scalar RHS).
        logits = jnp.where(lane < (c - ci * tc), logits, _MASK_VAL)

    # ---- online logsumexp (f32 accumulators resident across the C axis) ----
    tile_max = jnp.max(logits, axis=-1, keepdims=True)
    m_prev = m_scr[...]
    m_new = jnp.maximum(m_prev, tile_max)
    l_scr[...] = (l_scr[...] * jnp.exp(m_prev - m_new)
                  + jnp.sum(jnp.exp(logits - m_new), axis=-1, keepdims=True))
    m_scr[...] = m_new

    # ---- target-logit gather: fold tile offset into the (tn,1) target side ----
    tgt_local = tgt - ci * tc
    t_scr[...] += jnp.sum(jnp.where(lane == tgt_local, logits, 0.0),
                          axis=-1, keepdims=True)

    @pl.when(ci == last_ci)
    def _finalize():
        per_example = m_scr[...] + jnp.log(l_scr[...]) - t_scr[...]   # (tn, 1)
        if mask_rows:
            row = jax.lax.broadcasted_iota(jnp.int32, (tn, 1), 0)
            per_example = jnp.where(row < (n - ni * tn), per_example, 0.0)
        tile_sum = jnp.sum(per_example)
        # Lane-dense (8,128) output block: tile sum at [0,0], zeros elsewhere.
        sub = jax.lax.broadcasted_iota(jnp.int32, (8, 128), 0)
        ln = jax.lax.broadcasted_iota(jnp.int32, (8, 128), 1)
        partial_ref[...] = jnp.where((sub == 0) & (ln == 0), tile_sum, 0.0)


def cross_entropy_loss(y_hat, y):
    """y_hat: (N, C) float logits; y: (N,) int class indices. Returns scalar f32."""
    n, c = y_hat.shape
    itemsize = jnp.dtype(y_hat.dtype).itemsize

    # ---- class tiling: lane-dense (multiple of 128), no HBM pad copy --------
    c128 = _round_up(c, 128)
    if c128 <= _MAX_C_BLOCK:
        tc = c128                                   # single C tile
    else:
        tc = 4096 if itemsize <= 2 else 2048        # ~same bytes/tile for bf16/f32
    num_c_tiles = pl.cdiv(c, tc)

    # ---- row tiling: sublane-dense per dtype, >= 2 tiles for megacore -------
    sub_mult = 8 if itemsize >= 4 else (16 if itemsize == 2 else 32)
    tn_cap = min(1024, max(512, _TARGET_TILE_BYTES // (tc * itemsize)))
    tn_cap = _round_up(tn_cap, sub_mult)
    tn = min(_round_up(n, sub_mult), tn_cap)
    if pl.cdiv(n, tn) == 1 and n > sub_mult:
        tn = _round_up(pl.cdiv(n, 2), sub_mult)     # give v7x's 2 TCs work
    num_n_tiles = pl.cdiv(n, tn)

    mask_rows = (num_n_tiles * tn) != n
    mask_cols = (num_c_tiles * tc) != c

    targets = y.reshape(n, 1).astype(jnp.int32)

    kernel = functools.partial(_ce_kernel, n=n, c=c, tn=tn, tc=tc,
                               mask_rows=mask_rows, mask_cols=mask_cols)

    # ---- VMEM budget: double-buffered logits tile + headroom ----------------
    tile_bytes = tn * tc * itemsize
    vmem_limit = int(min(max(2 * tile_bytes + (4 << 20), 16 << 20), 48 << 20))

    cost = pl.CostEstimate(
        flops=5 * n * c,
        transcendentals=n * c,
        bytes_accessed=n * c * itemsize + n * 4 + num_n_tiles * 8 * 128 * 4,
    )

    partials = pl.pallas_call(
        kernel,
        out_shape=jax.ShapeDtypeStruct((num_n_tiles * 8, 128), jnp.float32),
        grid_spec=pltpu.PrefetchScalarGridSpec(
            num_scalar_prefetch=0,
            grid=(num_n_tiles, num_c_tiles),
            in_specs=[
                pl.BlockSpec((tn, tc), lambda ni, ci: (ni, ci)),
                pl.BlockSpec((tn, 1), lambda ni, ci: (ni, 0)),
            ],
            out_specs=pl.BlockSpec((8, 128), lambda ni, ci: (ni, 0)),
            scratch_shapes=[
                pltpu.VMEM((tn, 1), jnp.float32),   # running max
                pltpu.VMEM((tn, 1), jnp.float32),   # running exp-sum
                pltpu.VMEM((tn, 1), jnp.float32),   # running target logit
            ],
        ),
        compiler_params=pltpu.CompilerParams(
            dimension_semantics=("parallel", "arbitrary"),
            vmem_limit_bytes=vmem_limit,
        ),
        cost_estimate=cost,
    )(y_hat, targets)

    # Final reduction / mean over the true N in the wrapper (keeps the row
    # axis "parallel" inside the kernel).
    return jnp.sum(partials) / jnp.float32(n)


def _reference(y_hat, y):
    logits = y_hat.astype(jnp.float32)
    return jnp.mean(
        jax.nn.logsumexp(logits, axis=-1)
        - jnp.take_along_axis(logits, y[:, None], axis=-1)[:, 0]
    )


if __name__ == "__main__":
    key = jax.random.PRNGKey(0)
    k1, k2, k3, k4, k5, k6 = jax.random.split(key, 6)

    # Case 1: tiny batch, C < 128 (single lane-padded class tile, col mask).
    n1, c1 = 8, 32
    y_hat1 = jax.random.normal(k1, (n1, c1), dtype=jnp.float32)
    y1 = jax.random.randint(k2, (n1,), 0, c1, dtype=jnp.int32)
    loss1 = jax.block_until_ready(cross_entropy_loss(y_hat1, y1))
    ref1 = _reference(y_hat1, y1)
    assert jnp.allclose(loss1, ref1, atol=1e-5, rtol=1e-5), (loss1, ref1)

    # Case 2: ragged rows + ragged vocab-scale C (online LSE over 3 C tiles,
    # 2 row tiles, row and column masks active).
    n2, c2 = 10, 4500
    y_hat2 = jax.random.normal(k3, (n2, c2), dtype=jnp.float32)
    y2 = jax.random.randint(k4, (n2,), 0, c2, dtype=jnp.int32)
    loss2 = jax.block_until_ready(cross_entropy_loss(y_hat2, y2))
    ref2 = _reference(y_hat2, y2)
    assert jnp.allclose(loss2, ref2, atol=1e-4, rtol=1e-4), (loss2, ref2)

    # Case 3: bf16 logits, lane/sublane-exact shapes (no masks).
    n3, c3 = 16, 640
    y_hat3 = jax.random.normal(k5, (n3, c3), dtype=jnp.float32).astype(jnp.bfloat16)
    y3 = jax.random.randint(k6, (n3,), 0, c3, dtype=jnp.int32)
    loss3 = jax.block_until_ready(cross_entropy_loss(y_hat3, y3))
    ref3 = _reference(y_hat3, y3)
    assert jnp.allclose(loss3, ref3, atol=1e-3, rtol=1e-3), (loss3, ref3)

    print("KERNEL_OK")
</pallas_src>

<mosaic_0001>
module attributes {stable_mosaic.version = 11 : i64} {
  func.func @_ce_kernel(%arg0: i32, %arg1: i32, %arg2: memref<8x128xf32, #tpu.memory_space<vmem>>, %arg3: memref<8x1xi32, #tpu.memory_space<vmem>>, %arg4: memref<8x128xf32, #tpu.memory_space<vmem>>, %arg5: memref<8x1xf32, #tpu.memory_space<vmem>>, %arg6: memref<8x1xf32, #tpu.memory_space<vmem>>, %arg7: memref<8x1xf32, #tpu.memory_space<vmem>>) attributes {dimension_semantics = [#tpu.dimension_semantics<parallel>, #tpu.dimension_semantics<arbitrary>], iteration_bounds = array<i64: 1, 1>, scalar_prefetch = 0 : i64, scratch_operands = 3 : i64, tpu.core_type = #tpu.core_type<tc>, window_params = [{transform_indices = @transform_0, window_bounds = array<i64: 8, 128>}, {transform_indices = @transform_1, window_bounds = array<i64: 8, 1>}, {transform_indices = @transform_2, window_bounds = array<i64: 8, 128>}]} {
    %c0_i32 = arith.constant 0 : i32
    %0 = arith.cmpi eq, %arg1, %c0_i32 : i32
    %1 = arith.extui %0 : i1 to i32
    %c0_i32_0 = arith.constant 0 : i32
    %2 = arith.cmpi ne, %1, %c0_i32_0 : i32
    scf.if %2 {
      %cst_23 = arith.constant 0xFF800000 : f32
      %43 = vector.broadcast %cst_23 : f32 to vector<8x1xf32>
      %c0_24 = arith.constant 0 : index
      %c0_25 = arith.constant 0 : index
      %44 = vector.load %arg5[%c0_24, %c0_25] : memref<8x1xf32, #tpu.memory_space<vmem>>, vector<8x1xf32>
      tpu.vector_store %arg5[%c0_24, %c0_25], %43 {strides = array<i32>} : memref<8x1xf32, #tpu.memory_space<vmem>>, vector<8x1xf32>,
      %cst_26 = arith.constant 0.000000e+00 : f32
      %45 = vector.broadcast %cst_26 : f32 to vector<8x1xf32>
      %c0_27 = arith.constant 0 : index
      %c0_28 = arith.constant 0 : index
      %46 = vector.load %arg6[%c0_27, %c0_28] : memref<8x1xf32, #tpu.memory_space<vmem>>, vector<8x1xf32>
      tpu.vector_store %arg6[%c0_27, %c0_28], %45 {strides = array<i32>} : memref<8x1xf32, #tpu.memory_space<vmem>>, vector<8x1xf32>,
      %cst_29 = arith.constant 0.000000e+00 : f32
      %47 = vector.broadcast %cst_29 : f32 to vector<8x1xf32>
      %c0_30 = arith.constant 0 : index
      %c0_31 = arith.constant 0 : index
      %48 = vector.load %arg7[%c0_30, %c0_31] : memref<8x1xf32, #tpu.memory_space<vmem>>, vector<8x1xf32>
      tpu.vector_store %arg7[%c0_30, %c0_31], %47 {strides = array<i32>} : memref<8x1xf32, #tpu.memory_space<vmem>>, vector<8x1xf32>,
    } else {
    }
    %c0 = arith.constant 0 : index
    %c0_1 = arith.constant 0 : index
    %3 = vector.load %arg2[%c0, %c0_1] : memref<8x128xf32, #tpu.memory_space<vmem>>, vector<8x128xf32>
    %c0_2 = arith.constant 0 : index
    %c0_3 = arith.constant 0 : index
    %4 = vector.load %arg3[%c0_2, %c0_3] : memref<8x1xi32, #tpu.memory_space<vmem>>, vector<8x1xi32>
    %5 = tpu.iota {dimensions = array<i32: 1>} : vector<8x128xi32>
    %c128_i32 = arith.constant 128 : i32
    %6 = arith.muli %arg1, %c128_i32 : i32
    %c32_i32 = arith.constant 32 : i32
    %7 = arith.subi %c32_i32, %6 : i32
    %8 = vector.broadcast %7 : i32 to vector<8x128xi32>
    %9 = arith.cmpi slt, %5, %8 : vector<8x128xi32>
    %cst = arith.constant -1.000000e+30 : f32
    %10 = vector.broadcast %cst : f32 to vector<8x128xf32>
    %11 = arith.select %9, %3, %10 : vector<8x128xi1>, vector<8x128xf32>
    %cst_4 = arith.constant dense<0xFF800000> : vector<8xf32>
    %12 = vector.multi_reduction <maximumf>, %11, %cst_4 [1] : vector<8x128xf32> to vector<8xf32>
    %13 = vector.shape_cast %12 : vector<8xf32> to vector<8x1xf32>
    %c0_5 = arith.constant 0 : index
    %c0_6 = arith.constant 0 : index
    %14 = vector.load %arg5[%c0_5, %c0_6] : memref<8x1xf32, #tpu.memory_space<vmem>>, vector<8x1xf32>
    %15 = arith.maximumf %14, %13 : vector<8x1xf32>
    %c0_7 = arith.constant 0 : index
    %c0_8 = arith.constant 0 : index
    %16 = vector.load %arg6[%c0_7, %c0_8] : memref<8x1xf32, #tpu.memory_space<vmem>>, vector<8x1xf32>
    %17 = arith.subf %14, %15 : vector<8x1xf32>
    %18 = math.exp %17 : vector<8x1xf32>
    %19 = arith.mulf %16, %18 : vector<8x1xf32>
    %20 = vector.broadcast %15 : vector<8x1xf32> to vector<8x128xf32>
    %21 = arith.subf %11, %20 : vector<8x128xf32>
    %22 = math.exp %21 : vector<8x128xf32>
    %cst_9 = arith.constant dense<0.000000e+00> : vector<8xf32>
    %23 = vector.multi_reduction <add>, %22, %cst_9 [1] : vector<8x128xf32> to vector<8xf32>
    %24 = vector.shape_cast %23 : vector<8xf32> to vector<8x1xf32>
    %25 = arith.addf %19, %24 : vector<8x1xf32>
    %c0_10 = arith.constant 0 : index
    %c0_11 = arith.constant 0 : index
    %26 = vector.load %arg6[%c0_10, %c0_11] : memref<8x1xf32, #tpu.memory_space<vmem>>, vector<8x1xf32>
    tpu.vector_store %arg6[%c0_10, %c0_11], %25 {strides = array<i32>} : memref<8x1xf32, #tpu.memory_space<vmem>>, vector<8x1xf32>,
    %c0_12 = arith.constant 0 : index
    %c0_13 = arith.constant 0 : index
    %27 = vector.load %arg5[%c0_12, %c0_13] : memref<8x1xf32, #tpu.memory_space<vmem>>, vector<8x1xf32>
    tpu.vector_store %arg5[%c0_12, %c0_13], %15 {strides = array<i32>} : memref<8x1xf32, #tpu.memory_space<vmem>>, vector<8x1xf32>,
    %c128_i32_14 = arith.constant 128 : i32
    %28 = arith.muli %arg1, %c128_i32_14 : i32
    %29 = vector.broadcast %28 : i32 to vector<8x1xi32>
    %30 = arith.subi %4, %29 : vector<8x1xi32>
    %c0_15 = arith.constant 0 : index
    %c0_16 = arith.constant 0 : index
    %31 = vector.load %arg7[%c0_15, %c0_16] : memref<8x1xf32, #tpu.memory_space<vmem>>, vector<8x1xf32>
    %32 = vector.broadcast %30 : vector<8x1xi32> to vector<8x128xi32>
    %33 = arith.cmpi eq, %5, %32 : vector<8x128xi32>
    %cst_17 = arith.constant 0.000000e+00 : f32
    %34 = vector.broadcast %cst_17 : f32 to vector<8x128xf32>
    %35 = arith.select %33, %11, %34 : vector<8x128xi1>, vector<8x128xf32>
    %cst_18 = arith.constant dense<0.000000e+00> : vector<8xf32>
    %36 = vector.multi_reduction <add>, %35, %cst_18 [1] : vector<8x128xf32> to vector<8xf32>
    %37 = vector.shape_cast %36 : vector<8xf32> to vector<8x1xf32>
    %38 = arith.addf %31, %37 : vector<8x1xf32>
    %c0_19 = arith.constant 0 : index
    %c0_20 = arith.constant 0 : index
    %39 = vector.load %arg7[%c0_19, %c0_20] : memref<8x1xf32, #tpu.memory_space<vmem>>, vector<8x1xf32>
    tpu.vector_store %arg7[%c0_19, %c0_20], %38 {strides = array<i32>} : memref<8x1xf32, #tpu.memory_space<vmem>>, vector<8x1xf32>,
    %c0_i32_21 = arith.constant 0 : i32
    %40 = arith.cmpi eq, %arg1, %c0_i32_21 : i32
    %41 = arith.extui %40 : i1 to i32
    %c0_i32_22 = arith.constant 0 : i32
    %42 = arith.cmpi ne, %41, %c0_i32_22 : i32
    scf.if %42 {
      %c0_23 = arith.constant 0 : index
      %c0_24 = arith.constant 0 : index
      %43 = vector.load %arg5[%c0_23, %c0_24] : memref<8x1xf32, #tpu.memory_space<vmem>>, vector<8x1xf32>
      %c0_25 = arith.constant 0 : index
      %c0_26 = arith.constant 0 : index
      %44 = vector.load %arg6[%c0_25, %c0_26] : memref<8x1xf32, #tpu.memory_space<vmem>>, vector<8x1xf32>
      %45 = math.log %44 : vector<8x1xf32>
      %46 = arith.addf %43, %45 : vector<8x1xf32>
      %c0_27 = arith.constant 0 : index
      %c0_28 = arith.constant 0 : index
      %47 = vector.load %arg7[%c0_27, %c0_28] : memref<8x1xf32, #tpu.memory_space<vmem>>, vector<8x1xf32>
      %48 = arith.subf %46, %47 : vector<8x1xf32>
      %49 = vector.shape_cast %48 : vector<8x1xf32> to vector<1x8x1xf32>
      %cst_29 = arith.constant dense<0.000000e+00> : vector<1xf32>
      %50 = vector.multi_reduction <add>, %49, %cst_29 [1, 2] : vector<1x8x1xf32> to vector<1xf32>
      %51 = vector.shape_cast %50 : vector<1xf32> to vector<1x1x1xf32>
      %52 = vector.extract %51[0, 0, 0] : f32 from vector<1x1x1xf32>
      %53 = tpu.iota {dimensions = array<i32: 0>} : vector<8x128xi32>
      %54 = tpu.iota {dimensions = array<i32: 1>} : vector<8x128xi32>
      %c0_i32_30 = arith.constant 0 : i32
      %55 = vector.broadcast %c0_i32_30 : i32 to vector<8x128xi32>
      %56 = arith.cmpi eq, %53, %55 : vector<8x128xi32>
      %c0_i32_31 = arith.constant 0 : i32
      %57 = vector.broadcast %c0_i32_31 : i32 to vector<8x128xi32>
      %58 = arith.cmpi eq, %54, %57 : vector<8x128xi32>
      %59 = arith.andi %56, %58 : vector<8x128xi1>
      %cst_32 = arith.constant 0.000000e+00 : f32
      %60 = vector.broadcast %52 : f32 to vector<8x128xf32>
      %61 = vector.broadcast %cst_32 : f32 to vector<8x128xf32>
      %62 = arith.select %59, %60, %61 : vector<8x128xi1>, vector<8x128xf32>
      %c0_33 = arith.constant 0 : index
      %c0_34 = arith.constant 0 : index
      %63 = vector.load %arg4[%c0_33, %c0_34] : memref<8x128xf32, #tpu.memory_space<vmem>>, vector<8x128xf32>
      tpu.vector_store %arg4[%c0_33, %c0_34], %62 {strides = array<i32>} : memref<8x128xf32, #tpu.memory_space<vmem>>, vector<8x128xf32>,
    } else {
    }
    return
  }
  func.func @transform_0(%arg0: i32, %arg1: i32) -> (i32, i32) {
    %c0_i32 = arith.constant 0 : i32
    return %arg0, %arg1 : i32, i32
  }
  func.func @transform_1(%arg0: i32, %arg1: i32) -> (i32, i32) {
    %c0_i32 = arith.constant 0 : i32
    %c0_i32_0 = arith.constant 0 : i32
    return %arg0, %c0_i32 : i32, i32
  }
  func.func @transform_2(%arg0: i32, %arg1: i32) -> (i32, i32) {
    %c0_i32 = arith.constant 0 : i32
    %c0_i32_0 = arith.constant 0 : i32
    return %arg0, %c0_i32 : i32, i32
  }
}

</mosaic_0001>

<llo_original>
// kernel: tpu_custom_call.1
$region0: #{tpu_custom_call.1}
  #allocation0 [shape = 'u32[]', space=smem, size = 0x4, offset = 0x4, fixed_abs, tag = 'smem constant byte address 0x4 - core index']
  #allocation1 [shape = 'u32[72,128]{1,0:T(1,128)}', space=vmem, size = 0x9000, scoped, tag = 'internal scratch']
  #allocation2 [shape = 'f32[8,1]{1,0:T(8,128)}', space=vmem, size = 0x1000, scoped, tag = 'scratch operand']
  #allocation3 [shape = 'f32[8,1]{1,0:T(8,128)}', space=vmem, size = 0x1000, scoped, tag = 'scratch operand']
  #allocation4 [shape = 'f32[8,1]{1,0:T(8,128)}', space=vmem, size = 0x1000, scoped, tag = 'scratch operand']
  %s0 = inlined_call_operand.vmem [shape: f32[8,32], index: 0, kind: input, shape index: {}]
  %s1 = inlined_call_operand.vmem [shape: s32[8,1], index: 1, kind: input, shape index: {}]
  %s2 = inlined_call_operand.hbm [shape: f32[8,128], index: 2, kind: output, shape index: {}]
  %s3 = sld [smem:[#allocation0]]
  $region26: #{tpu_custom_call.1} parent=0
    _
  %s5 = ssub.s32 1, %s3
  %s6 = scalar_select 0, %s5, %s3
  $region1: #{tpu_custom_call.1} parent=0
    #allocation5 [shape = 'u8[4096]{0}', space=vmem, size = 0x1000, scoped, tag = 'output window, operand 0, single buffered']
    #allocation6 [shape = 's32[1]{0}', space=sflag, size = 0x4, scoped, tag = 'scoped memory for tpu_custom_call.1']
    %7 = vsyncpa [#allocation6], 0
    // Predicated region
    $region2: #{tpu_custom_call.1} parent=1 // pred_check
      _
    $region3: #{tpu_custom_call.1} parent=1 // pred_check_branch
      %9 = sbr.rel (0) target = $region5
    $region4: #{tpu_custom_call.1} parent=1 // pred_region
      _
    $region5: #{tpu_custom_call.1} parent=1 // pred_fallthru
      _
    // Predicated region
    $region6: #{tpu_custom_call.1} parent=1 // pred_check
      _
    $region7: #{tpu_custom_call.1} parent=1 // pred_check_branch
      %11 = sbr.rel (0) target = $region9
    $region8: #{tpu_custom_call.1} parent=1 // pred_region
      _
    $region9: #{tpu_custom_call.1} parent=1 // pred_fallthru
      _
    %p12 = scmp.eq.s32.totalorder 0, 0
    // Predicated region
    $region10: #{tpu_custom_call.1} parent=1 // pred_check
      %p13 = pneg %p12
    $region11: #{tpu_custom_call.1} parent=1 // pred_check_branch
      %15 = sbr.rel (%p13) target = $region13
    $region12: #{tpu_custom_call.1} parent=1 // pred_region
      %vm16 = vcmask 7168
      %17 = vst.msk [vmem:[#allocation2] sm:$0xff] %vm16, -inf
      %18 = vst.msk [vmem:[#allocation3] sm:$0xff] %vm16, 0.0
      %19 = vst.msk [vmem:[#allocation4] sm:$0xff] %vm16, 0.0
    $region13: #{tpu_custom_call.1} parent=1 // pred_fallthru
      _
    %v20 = vld [vmem:[%s0] sm:$0xff]
    %v21 = vld [vmem:[%s1] sm:$0xff]
    %v22 = vlaneseq
    %v23 = vand.u32 %v22, 127
    %s24 = smul.u32 0, 128
    %s25 = ssub.s32 32, %s24
    %v26 = vstv %s25
    %vm27 = vcmp.lt.s32.totalorder %v23, %v26
    %v28 = vsel %vm27, %v20, -1e+30
    %29 = vmax.xlane.f32.xlu0 %v28
    %v30 = vpop.xlane.xlu0 %29
    %v31 = vld [vmem:[#allocation2] sm:$0xff]
    %v32 = vmax.f32 %v31, %v30
    %v33 = vld [vmem:[#allocation3] sm:$0xff]
    %v34 = vsub.f32 %v31, %v32
    %v35 = vmul.f32 %v34, 1.442695
    %v36 = vpow.pop %v35
    %v37 = vmul.f32 %v33, %v36
    %39 = vset.pattern.permute.xlu0 0
    %40 = vperm.xlu0 %39, %v32
    %v41 = vpop.permute.xlu0 %40
    %v43 = vsub.f32 %v28, %v41
    %v44 = vmul.f32 %v43, 1.442695
    %v45 = vpow.pop %v44
    %46 = vadd.xlane.f32.xlu0 %v45
    %v47 = vpop.xlane.xlu0 %46
    %v48 = vadd.f32 %v37, %v47
    %vm49 = vcmask 7168
    %50 = vst.msk [vmem:[#allocation3] sm:$0xff] %vm49, %v48
    %51 = vst.msk [vmem:[#allocation2] sm:$0xff] %vm49, %v32
    %v52 = vstv %s24
    %v53 = vsub.s32 %v21, %v52
    %v54 = vld [vmem:[#allocation4] sm:$0xff]
    %55 = vset.pattern.permute.xlu0 0
    %56 = vperm.xlu0 %55, %v53
    %v57 = vpop.permute.xlu0 %56
    %vm58 = vcmp.eq.s32.totalorder %v23, %v57
    %v59 = vsel %vm58, %v28, 0.0
    %60 = vadd.xlane.f32.xlu0 %v59
    %v61 = vpop.xlane.xlu0 %60
    %v62 = vadd.f32 %v54, %v61
    %63 = vst.msk [vmem:[#allocation4] sm:$0xff] %vm49, %v62
    // Predicated region
    $region14: #{tpu_custom_call.1} parent=1 // pred_check
      %p64 = pneg %p12
    $region15: #{tpu_custom_call.1} parent=1 // pred_check_branch
      %66 = sbr.rel (%p64) target = $region17
    $region16: #{tpu_custom_call.1} parent=1 // pred_region
      %v67 = vld [vmem:[#allocation2] sm:$0xff]
      %v68 = vld [vmem:[#allocation3] sm:$0xff]
      %v69 = vlog2.pop %v68
      %v70 = vmul.f32 %v69, 0.6931472
      %v71 = vadd.f32 %v67, %v70
      %v72 = vld [vmem:[#allocation4] sm:$0xff]
      %v73 = vsub.f32 %v71, %v72
      %v74 = vsel %vm49, %v73, 0.0
      %75 = vadd.xlane.f32.xlu0 %v74
      %v76 = vpop.xlane.xlu0 %75
      %v77 = vrot.slane %v76, 4
      %v78 = vadd.f32 %v76, %v77
      %v79 = vrot.slane %v78, 2
      %v80 = vadd.f32 %v78, %v79
      %v81 = vrot.slane %v80, 1
      %v82 = vadd.f32 %v80, %v81
      %s83 = vtos %v82
      %v84 = vlaneseq
      %v85 = vshrl.u32 %v84, 7
      %vm86 = vcmp.eq.s32.totalorder %v85, 0
      %vm87 = vcmp.eq.s32.totalorder %v23, 0
      %vm88 = vmand %vm86, %vm87
      %v89 = vstv %s83
      %v90 = vsel %vm88, %v89, 0.0
      %91 = vst [vmem:[#allocation5] sm:$0xff] %v90
    $region17: #{tpu_custom_call.1} parent=1 // pred_fallthru
      _
    // Predicated region
    $region18: #{tpu_custom_call.1} parent=1 // pred_check
      _
    $region19: #{tpu_custom_call.1} parent=1 // pred_check_branch
      %93 = sbr.rel (0) target = $region21
    $region20: #{tpu_custom_call.1} parent=1 // pred_region
      %95 = vsyncadd [#allocation6], 0
      %s97 = sshll.u32 [#allocation5], 4
      %s98 = int_to_ptr.vmem [resolvable:$true] %s97
      %s99 = sshll.u32 %s2, 4
      %s100 = int_to_ptr.hbm [resolvable:$true] %s99
      %102 = dma.vmem_to_hbm [thread:$0]  %s98, 128, %s100, [#allocation6]
    $region21: #{tpu_custom_call.1} parent=1 // pred_fallthru
      _
    // Predicated region
    $region22: #{tpu_custom_call.1} parent=1 // pred_check
      _
    $region23: #{tpu_custom_call.1} parent=1 // pred_check_branch
      %104 = sbr.rel (0) target = $region25
    $region24: #{tpu_custom_call.1} parent=1 // pred_region
      %106 = dma.done [#allocation6], 128
    $region25: #{tpu_custom_call.1} parent=1 // pred_fallthru
      _
    %107 = vsyncpa [#allocation6], 1

</llo_original>
